<compile_context>
chip_gen: v7x
topology: tpu7x:2x2x1
jax: 0.10.0
libtpu: 0.0.40
codegen_flags: <defaults>
</compile_context>

<pallas_src>
import functools

import jax
import jax.numpy as jnp
from jax import lax
from jax.experimental import pallas as pl
from jax.experimental.pallas import tpu as pltpu

_EPS = 1e-8
_MAX_TILE_ROWS = 8192  # cap on sublane extent per block


def _cos_loss_kernel(x_ref, y_ref, out_ref, *, total_rows, tile_rows, needs_mask):
    """One grid step: sum of per-row cosine similarities for this tile."""
    x = x_ref[...].astype(jnp.float32)                         # (TM, D)
    y = y_ref[...].astype(jnp.float32)                         # (TM, D)

    dot = jnp.sum(x * y, axis=-1, keepdims=True)               # (TM, 1)
    xx = jnp.sum(x * x, axis=-1, keepdims=True)                # (TM, 1)
    yy = jnp.sum(y * y, axis=-1, keepdims=True)                # (TM, 1)
    # cos = dot / max(|x|*|y|, eps)  ==  dot * rsqrt(max(xx*yy, eps^2))
    cos = dot * lax.rsqrt(jnp.maximum(xx * yy, jnp.float32(_EPS * _EPS)))

    if needs_mask:  # static: only emitted for a ragged tail tile
        rows = pl.program_id(0) * tile_rows + lax.broadcasted_iota(
            jnp.int32, (tile_rows, 1), 0)
        cos = jnp.where(rows < total_rows, cos, 0.0)

    partial = jnp.sum(cos, axis=(0, 1), keepdims=True)          # (1, 1) f32
    out_ref[...] = jnp.broadcast_to(partial, (8, 128))          # lane-aligned block


def _vmem_capacity_bytes():
    try:
        info = pltpu.get_tpu_info()
        cap = getattr(info, "vmem_capacity_bytes", None)
        if cap:
            return int(cap)
    except Exception:
        pass
    return 64 * 1024 * 1024  # conservative fallback (v7x per-core VMEM)


def _round_up(n, m):
    return ((n + m - 1) // m) * m


def cosine_dim_loss(x, y, *, tile_rows=None, vmem_limit_bytes=None):
    """loss = 1 - mean(cosine_similarity(x, y, dim=-1)).  x, y: (..., D)."""
    assert x.shape == y.shape, (x.shape, y.shape)
    d = x.shape[-1]
    x2 = x.reshape(-1, d)
    y2 = y.reshape(-1, d)
    m = x2.shape[0]

    if vmem_limit_bytes is None:
        cap = _vmem_capacity_bytes()
        # ~75% of physical VMEM: 96 MiB on v5e/v6e (128 MiB), 48 MiB on v7x (64 MiB).
        vmem_limit_bytes = min((cap * 3) // 4, 96 * 1024 * 1024)
    vmem_limit_bytes = int(vmem_limit_bytes)

    if tile_rows is None:
        # 2 inputs x 2 pipeline buffers must fit the budget (minus headroom).
        # VMEM rows are lane-padded to 128, so small D does not shrink the
        # per-row footprint below 128 elements.
        lane_d = _round_up(d, 128)
        bytes_per_row = 2 * lane_d * (jnp.dtype(x2.dtype).itemsize +
                                      jnp.dtype(y2.dtype).itemsize)
        budget = max(vmem_limit_bytes - (4 << 20), 2 << 20)
        t = budget // bytes_per_row
        t = min(t, _MAX_TILE_ROWS, _round_up(m, 8))
        tile_rows = max(8, (t // 8) * 8)
    tile_rows = int(tile_rows)

    num_tiles = int(pl.cdiv(m, tile_rows))
    needs_mask = (m % tile_rows) != 0

    kernel = functools.partial(
        _cos_loss_kernel,
        total_rows=m, tile_rows=tile_rows, needs_mask=needs_mask)

    partials = pl.pallas_call(
        kernel,
        out_shape=jax.ShapeDtypeStruct((num_tiles, 8, 128), jnp.float32),
        grid_spec=pltpu.PrefetchScalarGridSpec(
            num_scalar_prefetch=0,
            grid=(num_tiles,),
            in_specs=[
                pl.BlockSpec((tile_rows, d), lambda i: (i, 0)),
                pl.BlockSpec((tile_rows, d), lambda i: (i, 0)),
            ],
            out_specs=pl.BlockSpec((None, 8, 128), lambda i: (i, 0, 0)),
        ),
        compiler_params=pltpu.CompilerParams(
            dimension_semantics=("parallel",),   # independent tiles: megacore-able
            vmem_limit_bytes=vmem_limit_bytes,
        ),
    )(x2, y2)

    # Tiny final reduction over per-tile partials (plain XLA).
    return 1.0 - partials[:, 0, 0].sum() / jnp.float32(m)


def _reference(x, y):
    x = x.astype(jnp.float32)
    y = y.astype(jnp.float32)
    dot = jnp.sum(x * y, axis=-1)
    nx = jnp.linalg.norm(x, axis=-1)
    ny = jnp.linalg.norm(y, axis=-1)
    cos = dot / jnp.maximum(nx * ny, _EPS)
    return 1.0 - jnp.mean(cos)


if __name__ == "__main__":
    key = jax.random.PRNGKey(0)
    kx, ky, ka, kb = jax.random.split(key, 4)

    # Small shapes consistent with the module: batch=2, seq=8, hidden=32.
    x = jax.random.normal(kx, (2, 8, 32), dtype=jnp.float32)
    y = jax.random.normal(ky, (2, 8, 32), dtype=jnp.float32)
    loss = cosine_dim_loss(x, y)
    jax.block_until_ready(loss)
    ref = _reference(x, y)
    assert jnp.allclose(loss, ref, atol=1e-5, rtol=1e-5), (loss, ref)

    # Ragged row count (exercises tail masking) + native bf16 input DMA.
    xb = jax.random.normal(ka, (3, 7, 32), dtype=jnp.bfloat16)
    yb = jax.random.normal(kb, (3, 7, 32), dtype=jnp.bfloat16)
    loss_b = cosine_dim_loss(xb, yb)
    jax.block_until_ready(loss_b)
    ref_b = _reference(xb, yb)
    assert jnp.allclose(loss_b, ref_b, atol=1e-4, rtol=1e-4), (loss_b, ref_b)

    print("KERNEL_OK")
</pallas_src>

<mosaic_0001>
module attributes {stable_mosaic.version = 11 : i64} {
  func.func @_cos_loss_kernel(%arg0: i32, %arg1: memref<16x32xf32, #tpu.memory_space<vmem>>, %arg2: memref<16x32xf32, #tpu.memory_space<vmem>>, %arg3: memref<1x8x128xf32, #tpu.memory_space<vmem>>) attributes {dimension_semantics = [#tpu.dimension_semantics<parallel>], iteration_bounds = array<i64: 1>, scalar_prefetch = 0 : i64, scratch_operands = 0 : i64, tpu.core_type = #tpu.core_type<tc>, window_params = [{transform_indices = @transform_0, window_bounds = array<i64: 16, 32>}, {transform_indices = @transform_1, window_bounds = array<i64: 16, 32>}, {transform_indices = @transform_2, window_bounds = array<i64: 1, 8, 128>}]} {
    %c0 = arith.constant 0 : index
    %c0_0 = arith.constant 0 : index
    %0 = vector.load %arg1[%c0, %c0_0] : memref<16x32xf32, #tpu.memory_space<vmem>>, vector<16x32xf32>
    %c0_1 = arith.constant 0 : index
    %c0_2 = arith.constant 0 : index
    %1 = vector.load %arg2[%c0_1, %c0_2] : memref<16x32xf32, #tpu.memory_space<vmem>>, vector<16x32xf32>
    %2 = arith.mulf %0, %1 : vector<16x32xf32>
    %cst = arith.constant dense<0.000000e+00> : vector<16xf32>
    %3 = vector.multi_reduction <add>, %2, %cst [1] : vector<16x32xf32> to vector<16xf32>
    %4 = vector.shape_cast %3 : vector<16xf32> to vector<16x1xf32>
    %5 = arith.mulf %0, %0 : vector<16x32xf32>
    %cst_3 = arith.constant dense<0.000000e+00> : vector<16xf32>
    %6 = vector.multi_reduction <add>, %5, %cst_3 [1] : vector<16x32xf32> to vector<16xf32>
    %7 = vector.shape_cast %6 : vector<16xf32> to vector<16x1xf32>
    %8 = arith.mulf %1, %1 : vector<16x32xf32>
    %cst_4 = arith.constant dense<0.000000e+00> : vector<16xf32>
    %9 = vector.multi_reduction <add>, %8, %cst_4 [1] : vector<16x32xf32> to vector<16xf32>
    %10 = vector.shape_cast %9 : vector<16xf32> to vector<16x1xf32>
    %11 = arith.mulf %7, %10 : vector<16x1xf32>
    %cst_5 = arith.constant 1.000000e-16 : f32
    %12 = vector.broadcast %cst_5 : f32 to vector<16x1xf32>
    %13 = arith.maximumf %11, %12 : vector<16x1xf32>
    %14 = math.rsqrt %13 : vector<16x1xf32>
    %15 = arith.mulf %4, %14 : vector<16x1xf32>
    %16 = vector.shape_cast %15 : vector<16x1xf32> to vector<1x16x1xf32>
    %cst_6 = arith.constant dense<0.000000e+00> : vector<1xf32>
    %17 = vector.multi_reduction <add>, %16, %cst_6 [1, 2] : vector<1x16x1xf32> to vector<1xf32>
    %18 = vector.shape_cast %17 : vector<1xf32> to vector<1x1x1xf32>
    %19 = vector.extract %18[0, 0, 0] : f32 from vector<1x1x1xf32>
    %20 = vector.broadcast %19 : f32 to vector<1x1xf32>
    %21 = vector.shape_cast %20 : vector<1x1xf32> to vector<1x1xf32>
    %22 = vector.broadcast %21 : vector<1x1xf32> to vector<8x128xf32>
    %c0_7 = arith.constant 0 : index
    %c0_8 = arith.constant 0 : index
    %c0_9 = arith.constant 0 : index
    %23 = vector.load %arg3[%c0_7, %c0_8, %c0_9] : memref<1x8x128xf32, #tpu.memory_space<vmem>>, vector<1x8x128xf32>
    %24 = vector.shape_cast %23 : vector<1x8x128xf32> to vector<8x128xf32>
    %25 = vector.shape_cast %22 : vector<8x128xf32> to vector<1x8x128xf32>
    tpu.vector_store %arg3[%c0_7, %c0_8, %c0_9], %25 {strides = array<i32>} : memref<1x8x128xf32, #tpu.memory_space<vmem>>, vector<1x8x128xf32>,
    return
  }
  func.func @transform_0(%arg0: i32) -> (i32, i32) {
    %c0_i32 = arith.constant 0 : i32
    %c0_i32_0 = arith.constant 0 : i32
    return %arg0, %c0_i32 : i32, i32
  }
  func.func @transform_1(%arg0: i32) -> (i32, i32) {
    %c0_i32 = arith.constant 0 : i32
    %c0_i32_0 = arith.constant 0 : i32
    return %arg0, %c0_i32 : i32, i32
  }
  func.func @transform_2(%arg0: i32) -> (i32, i32, i32) {
    %c0_i32 = arith.constant 0 : i32
    %c0_i32_0 = arith.constant 0 : i32
    %c0_i32_1 = arith.constant 0 : i32
    return %arg0, %c0_i32, %c0_i32_0 : i32, i32, i32
  }
}

</mosaic_0001>

<llo_original>
// kernel: tpu_custom_call.1
$region0: #{tpu_custom_call.1}
  #allocation0 [shape = 'u32[]', space=smem, size = 0x4, offset = 0x4, fixed_abs, tag = 'smem constant byte address 0x4 - core index']
  #allocation1 [shape = 'u32[144,128]{1,0:T(1,128)}', space=vmem, size = 0x12000, scoped, tag = 'internal scratch']
  %s0 = inlined_call_operand.hbm [shape: f32[16,32], index: 0, kind: input, shape index: {}]
  %s1 = inlined_call_operand.hbm [shape: f32[16,32], index: 1, kind: input, shape index: {}]
  %s2 = inlined_call_operand.hbm [shape: f32[1,8,128], index: 2, kind: output, shape index: {}]
  %s3 = sld [smem:[#allocation0]]
  $region26: #{tpu_custom_call.1} parent=0
    _
  %s5 = ssub.s32 1, %s3
  %s6 = scalar_select 0, %s5, %s3
  $region1: #{tpu_custom_call.1} parent=0
    #allocation2 [shape = 'u8[8192]{0}', space=vmem, size = 0x2000, scoped, tag = 'input window, operand 0, single buffered']
    #allocation3 [shape = 's32[1]{0}', space=sflag, size = 0x4, scoped, tag = 'scoped memory for tpu_custom_call.1']
    #allocation4 [shape = 's32[1]{0}', space=sflag, size = 0x4, scoped, tag = 'scoped memory for tpu_custom_call.1']
    #allocation5 [shape = 'u8[8192]{0}', space=vmem, size = 0x2000, scoped, tag = 'input window, operand 1, single buffered']
    #allocation6 [shape = 's32[1]{0}', space=sflag, size = 0x4, scoped, tag = 'scoped memory for tpu_custom_call.1']
    #allocation7 [shape = 'u8[4096]{0}', space=vmem, size = 0x1000, scoped, tag = 'output window, operand 0, single buffered']
    %7 = vsyncpa [#allocation3], 0
    %8 = vsyncpa [#allocation6], 0
    %9 = vsyncpa [#allocation4], 0
    // Predicated region
    $region2: #{tpu_custom_call.1} parent=1 // pred_check
      _
    $region3: #{tpu_custom_call.1} parent=1 // pred_check_branch
      %11 = sbr.rel (0) target = $region5
    $region4: #{tpu_custom_call.1} parent=1 // pred_region
      %s13 = ssub.s32 256, 256
      %14 = vsyncadd [#allocation3], %s13
      %s15 = sshll.u32 [#allocation2], 4
      %s16 = int_to_ptr.vmem [resolvable:$true] %s15
      %21 = dma.hbm_to_vmem [thread:$0]  %s0, 256, %s16, [#allocation3], 128, 128, 8
    $region5: #{tpu_custom_call.1} parent=1 // pred_fallthru
      _
    // Predicated region
    $region6: #{tpu_custom_call.1} parent=1 // pred_check
      _
    $region7: #{tpu_custom_call.1} parent=1 // pred_check_branch
      %23 = sbr.rel (0) target = $region9
    $region8: #{tpu_custom_call.1} parent=1 // pred_region
      %s25 = ssub.s32 256, 256
      %26 = vsyncadd [#allocation6], %s25
      %s27 = sshll.u32 [#allocation5], 4
      %s28 = int_to_ptr.vmem [resolvable:$true] %s27
      %33 = dma.hbm_to_vmem [thread:$0]  %s1, 256, %s28, [#allocation6], 128, 128, 8
    $region9: #{tpu_custom_call.1} parent=1 // pred_fallthru
      _
    // Predicated region
    $region10: #{tpu_custom_call.1} parent=1 // pred_check
      _
    $region11: #{tpu_custom_call.1} parent=1 // pred_check_branch
      %35 = sbr.rel (0) target = $region13
    $region12: #{tpu_custom_call.1} parent=1 // pred_region
      %36 = dma.done [#allocation3], 256
    $region13: #{tpu_custom_call.1} parent=1 // pred_fallthru
      _
    // Predicated region
    $region14: #{tpu_custom_call.1} parent=1 // pred_check
      _
    $region15: #{tpu_custom_call.1} parent=1 // pred_check_branch
      %38 = sbr.rel (0) target = $region17
    $region16: #{tpu_custom_call.1} parent=1 // pred_region
      %39 = dma.done [#allocation6], 256
    $region17: #{tpu_custom_call.1} parent=1 // pred_fallthru
      _
    %v40 = vld [vmem:[#allocation2] sm:$0xff]
    %v41 = vld [vmem:[#allocation2 + $0x8] sm:$0xff]
    %v42 = vld [vmem:[#allocation5] sm:$0xff]
    %v43 = vld [vmem:[#allocation5 + $0x8] sm:$0xff]
    %v44 = vmul.f32 %v40, %v42
    %v45 = vmul.f32 %v41, %v43
    %vm46 = vcmask 261120
    %v47 = vsel %vm46, %v44, 0.0
    %48 = vadd.xlane.f32.xlu0 %v47
    %v49 = vpop.xlane.xlu0 %48
    %v50 = vsel %vm46, %v45, 0.0
    %51 = vadd.xlane.f32.xlu0 %v50
    %v52 = vpop.xlane.xlu0 %51
    %v53 = vmul.f32 %v40, %v40
    %v54 = vmul.f32 %v41, %v41
    %v55 = vsel %vm46, %v53, 0.0
    %56 = vadd.xlane.f32.xlu0 %v55
    %v57 = vpop.xlane.xlu0 %56
    %v58 = vsel %vm46, %v54, 0.0
    %59 = vadd.xlane.f32.xlu0 %v58
    %v60 = vpop.xlane.xlu0 %59
    %v61 = vmul.f32 %v42, %v42
    %v62 = vmul.f32 %v43, %v43
    %v63 = vsel %vm46, %v61, 0.0
    %64 = vadd.xlane.f32.xlu0 %v63
    %v65 = vpop.xlane.xlu0 %64
    %v66 = vsel %vm46, %v62, 0.0
    %67 = vadd.xlane.f32.xlu0 %v66
    %v68 = vpop.xlane.xlu0 %67
    %v69 = vmul.f32 %v57, %v65
    %v70 = vmul.f32 %v60, %v68
    %v71 = vmax.f32 %v69, 1e-16
    %v72 = vmax.f32 %v70, 1e-16
    %v73 = vrsqrt.pop %v71
    %v74 = vrsqrt.pop %v72
    %v75 = vmul.f32 %v49, %v73
    %v76 = vmul.f32 %v52, %v74
    %vm77 = vcmask 7168
    %v78 = vsel %vm77, %v75, 0.0
    %v79 = vsel %vm77, %v76, 0.0
    %v80 = vadd.f32 %v78, %v79
    %81 = vadd.xlane.f32.xlu0 %v80
    %v82 = vpop.xlane.xlu0 %81
    %v83 = vrot.slane %v82, 4
    %v84 = vadd.f32 %v82, %v83
    %v85 = vrot.slane %v84, 2
    %v86 = vadd.f32 %v84, %v85
    %v87 = vrot.slane %v86, 1
    %v88 = vadd.f32 %v86, %v87
    %s89 = vtos %v88
    %v90 = vstv %s89
    %91 = vst [vmem:[#allocation7] sm:$0xff] %v90
    // Predicated region
    $region18: #{tpu_custom_call.1} parent=1 // pred_check
      _
    $region19: #{tpu_custom_call.1} parent=1 // pred_check_branch
      %93 = sbr.rel (0) target = $region21
    $region20: #{tpu_custom_call.1} parent=1 // pred_region
      %s95 = ssub.s32 128, 128
      %96 = vsyncadd [#allocation4], %s95
      %s98 = sshll.u32 [#allocation7], 4
      %s99 = int_to_ptr.vmem [resolvable:$true] %s98
      %101 = dma.vmem_to_hbm [thread:$0]  %s99, 128, %s2, [#allocation4]
    $region21: #{tpu_custom_call.1} parent=1 // pred_fallthru
      _
    // Predicated region
    $region22: #{tpu_custom_call.1} parent=1 // pred_check
      _
    $region23: #{tpu_custom_call.1} parent=1 // pred_check_branch
      %103 = sbr.rel (0) target = $region25
    $region24: #{tpu_custom_call.1} parent=1 // pred_region
      %104 = dma.done [#allocation4], 128
    $region25: #{tpu_custom_call.1} parent=1 // pred_fallthru
      _
    %105 = vsyncpa [#allocation3], 1
    %106 = vsyncpa [#allocation6], 1
    %107 = vsyncpa [#allocation4], 1

</llo_original>
